<compile_context>
chip_gen: v5e
topology: v5e:2x2
jax: 0.10.0
libtpu: 0.0.40
codegen_flags: <defaults>
</compile_context>

<pallas_src>
import jax
import jax.numpy as jnp
from jax import lax
from jax.experimental import pallas as pl
from jax.experimental.pallas import tpu as pltpu


def _round_up(x, m):
    return ((x + m - 1) // m) * m


def _lintrans_kernel(x_ref, w_ref, b_ref, o_ref):
    # Single collapsed affine map (MXU, f32 accumulation).
    z = jnp.dot(x_ref[...], w_ref[...],
                preferred_element_type=jnp.float32) + b_ref[...]

    # scale(): per-row min/max normalization (dim=1, keepdim).
    zmax = jnp.max(z, axis=1, keepdims=True)
    zmin = jnp.min(z, axis=1, keepdims=True)
    inv_range = pl.reciprocal(zmax - zmin, approx=False)   # EUP reciprocal
    z_std = (z - zmin) * inv_range

    # F.normalize(p=2, dim=1, eps=1e-12):
    # 1 / max(sqrt(s), 1e-12) == min(rsqrt(s), 1e12)  -> EUP rsqrt + multiplies.
    sumsq = jnp.sum(z_std * z_std, axis=1, keepdims=True)
    inv_nrm = jnp.minimum(lax.rsqrt(sumsq), 1e12)
    o_ref[...] = (z_std * inv_nrm).astype(o_ref.dtype)


def lintrans_forward(x, params, *, tile_m=None,
                     mxu_dtype=jnp.bfloat16, out_dtype=jnp.float32):
    """LinTrans forward.

    x:         (N, D0) float array.
    params:    list of (W, b) with nn.Linear layout, W: (Dout, Din), b: (Dout,).
    tile_m:    optional explicit batch tile (rounded up to row alignment).
    mxu_dtype: dtype fed to HBM/MXU for x and the composed weight
               (default bf16; pass jnp.float32 for the strict-precision path).
    out_dtype: output dtype (default f32; bf16 allowed if the consumer tolerates it).
    """
    N, D0 = x.shape
    assert len(params) >= 1

    # ---- collapse the activation-free Linear chain into one affine map (f32) ----
    hp = lax.Precision.HIGHEST
    w_comb = jnp.asarray(params[0][0], jnp.float32).T          # (D0, D1)
    b_comb = jnp.asarray(params[0][1], jnp.float32).reshape(1, -1)
    for (w_l, b_l) in params[1:]:
        w_t = jnp.asarray(w_l, jnp.float32).T                  # (Din, Dout)
        w_comb = jnp.dot(w_comb, w_t, precision=hp)
        b_comb = jnp.dot(b_comb, w_t, precision=hp) + \
            jnp.asarray(b_l, jnp.float32).reshape(1, -1)
    d_out = w_comb.shape[1]

    w_c = w_comb.astype(mxu_dtype)
    b_c = b_comb.astype(jnp.float32)                            # bias stays f32
    x_c = x.astype(mxu_dtype)

    in_bytes = jnp.dtype(mxu_dtype).itemsize
    out_bytes = jnp.dtype(out_dtype).itemsize
    # Row alignment: 8 sublanes, doubled for sub-32-bit packing (bf16 -> 16).
    row_align = 8 * max(1, 4 // in_bytes)
    n_pad8 = _round_up(N, row_align)

    # ---- tile sizing: big tiles, balanced steps, minimal padding ----
    if tile_m is None:
        # Per-row working set: double-buffered x + out tiles, f32 intermediates.
        per_row = 2 * D0 * in_bytes + 2 * d_out * out_bytes + 6 * d_out * 4
        budget = 16 * 1024 * 1024                               # conservative VMEM budget
        cap = max(row_align, min(8192, (budget // per_row) // row_align * row_align))
        num_steps = pl.cdiv(n_pad8, cap)
        # v7x has 2 TensorCores; keep >=2 "parallel" steps when there is enough work.
        if num_steps < 2 and n_pad8 >= 2 * row_align:
            num_steps = 2
        tile_m = _round_up(pl.cdiv(n_pad8, num_steps), row_align)
    else:
        tile_m = _round_up(tile_m, row_align)

    num_steps = pl.cdiv(n_pad8, tile_m)
    n_pad = tile_m * num_steps                                  # waste < row_align*steps rows
    if n_pad != N:
        x_c = jnp.pad(x_c, ((0, n_pad - N), (0, 0)))

    # ---- explicit VMEM budget (safe for v7x 64 MiB physical / 32 MiB scoped) ----
    vmem_est = (tile_m * (2 * D0 * in_bytes + 2 * d_out * out_bytes + 6 * d_out * 4)
                + 2 * D0 * d_out * in_bytes + 2 * d_out * 4)
    vmem_limit = int(min(max(2 * vmem_est, 4 << 20), 32 << 20))

    cost = pl.CostEstimate(
        flops=2 * n_pad * D0 * d_out + 8 * n_pad * d_out,
        transcendentals=2 * n_pad,
        bytes_accessed=(n_pad * D0 * in_bytes + n_pad * d_out * out_bytes
                        + D0 * d_out * in_bytes + d_out * 4),
    )

    out = pl.pallas_call(
        _lintrans_kernel,
        out_shape=jax.ShapeDtypeStruct((n_pad, d_out), out_dtype),
        grid_spec=pl.GridSpec(
            grid=(num_steps,),
            in_specs=[
                pl.BlockSpec((tile_m, D0), lambda i: (i, 0)),   # x tile
                pl.BlockSpec((D0, d_out), lambda i: (0, 0)),    # composed W (resident)
                pl.BlockSpec((1, d_out), lambda i: (0, 0)),     # composed bias (resident)
            ],
            out_specs=pl.BlockSpec((tile_m, d_out), lambda i: (i, 0)),
        ),
        compiler_params=pltpu.CompilerParams(
            dimension_semantics=("parallel",),
            vmem_limit_bytes=vmem_limit,
        ),
        cost_estimate=cost,
    )(x_c, w_c, b_c)

    return out[:N] if n_pad != N else out


def reference_forward(x, params):
    """Pure-JAX reference (true-f32 matmuls) matching the PyTorch module."""
    hp = lax.Precision.HIGHEST
    out = jnp.asarray(x, jnp.float32)
    for (w, b) in params:
        out = jnp.dot(out, jnp.asarray(w, jnp.float32).T, precision=hp) \
            + jnp.asarray(b, jnp.float32).reshape(1, -1)
    zmax = out.max(axis=1, keepdims=True)
    zmin = out.min(axis=1, keepdims=True)
    z = (out - zmin) / (zmax - zmin)
    nrm = jnp.maximum(jnp.sqrt(jnp.sum(z * z, axis=1, keepdims=True)), 1e-12)
    return z / nrm


if __name__ == "__main__":
    # layers=2, dims=[32, 64, 16]; batch=16 (+ ragged and multi-tile checks).
    key = jax.random.PRNGKey(0)
    k_x, k_w1, k_b1, k_w2, k_b2, k_big = jax.random.split(key, 6)

    N, D0, D1, D2 = 16, 32, 64, 16

    x = jax.random.normal(k_x, (N, D0), dtype=jnp.float32)

    # nn.Linear-shaped parameters: W is (out, in), b is (out,).
    w1 = jax.random.normal(k_w1, (D1, D0), dtype=jnp.float32) * 0.1
    b1 = jax.random.normal(k_b1, (D1,), dtype=jnp.float32) * 0.1
    w2 = jax.random.normal(k_w2, (D2, D1), dtype=jnp.float32) * 0.1
    b2 = jax.random.normal(k_b2, (D2,), dtype=jnp.float32) * 0.1
    params = [(w1, b1), (w2, b2)]

    ref = reference_forward(x, params)

    # 1) Default path: bf16 HBM/MXU inputs, f32 accumulate + f32 epilogue.
    out_bf16 = jax.block_until_ready(lintrans_forward(x, params))
    assert out_bf16.shape == (N, D2)
    assert jnp.allclose(out_bf16, ref, atol=5e-2, rtol=5e-2), "bf16 mismatch vs reference"

    # 2) Strict-precision path: f32 MXU inputs (composed weights), 1e-5 tolerance.
    out_f32 = jax.block_until_ready(
        lintrans_forward(x, params, mxu_dtype=jnp.float32))
    assert out_f32.shape == (N, D2)
    assert jnp.allclose(out_f32, ref, atol=1e-5, rtol=1e-5), "f32 mismatch vs reference"

    # 3) Ragged batch (N not a multiple of 8) — handled by minimal wrapper padding.
    x_r = x[:13]
    out_r = jax.block_until_ready(
        lintrans_forward(x_r, params, mxu_dtype=jnp.float32))
    assert out_r.shape == (13, D2)
    assert jnp.allclose(out_r, reference_forward(x_r, params), atol=1e-5, rtol=1e-5), \
        "ragged-N mismatch vs reference"

    # 4) Larger batch — exercises the balanced multi-step grid (>=2 parallel steps).
    x_big = jax.random.normal(k_big, (777, D0), dtype=jnp.float32)
    out_big = jax.block_until_ready(
        lintrans_forward(x_big, params, mxu_dtype=jnp.float32))
    assert out_big.shape == (777, D2)
    assert jnp.allclose(out_big, reference_forward(x_big, params), atol=1e-5, rtol=1e-5), \
        "multi-tile mismatch vs reference"

    print("KERNEL_OK")
</pallas_src>

<mosaic_0001>
module attributes {stable_mosaic.version = 11 : i64} {
  func.func @_lintrans_kernel(%arg0: i32, %arg1: memref<16x32xbf16, #tpu.memory_space<vmem>>, %arg2: memref<32x16xbf16, #tpu.memory_space<vmem>>, %arg3: memref<1x16xf32, #tpu.memory_space<vmem>>, %arg4: memref<16x16xf32, #tpu.memory_space<vmem>>) attributes {dimension_semantics = [#tpu.dimension_semantics<parallel>], iteration_bounds = array<i64: 1>, scalar_prefetch = 0 : i64, scratch_operands = 0 : i64, tpu.core_type = #tpu.core_type<tc>, window_params = [{transform_indices = @transform_0, window_bounds = array<i64: 16, 32>}, {pipeline_mode = #tpu.pipeline_mode<synchronous>, transform_indices = @transform_1, window_bounds = array<i64: 32, 16>}, {pipeline_mode = #tpu.pipeline_mode<synchronous>, transform_indices = @transform_2, window_bounds = array<i64: 1, 16>}, {transform_indices = @transform_3, window_bounds = array<i64: 16, 16>}]} {
    %c0 = arith.constant 0 : index
    %c0_0 = arith.constant 0 : index
    %0 = vector.load %arg1[%c0, %c0_0] : memref<16x32xbf16, #tpu.memory_space<vmem>>, vector<16x32xbf16>
    %c0_1 = arith.constant 0 : index
    %c0_2 = arith.constant 0 : index
    %1 = vector.load %arg2[%c0_1, %c0_2] : memref<32x16xbf16, #tpu.memory_space<vmem>>, vector<32x16xbf16>
    %cst = arith.constant dense<0.000000e+00> : vector<16x16xf32>
    %2 = tpu.matmul %0, %1, %cst {dimension_numbers = #tpu.dot_dimension_numbers<[1], [0], [0], [1], [0, 0, 1, 1], [], []>} : vector<16x32xbf16>, vector<32x16xbf16>, vector<16x16xf32> -> vector<16x16xf32>
    %c0_3 = arith.constant 0 : index
    %c0_4 = arith.constant 0 : index
    %3 = vector.load %arg3[%c0_3, %c0_4] : memref<1x16xf32, #tpu.memory_space<vmem>>, vector<1x16xf32>
    %4 = vector.broadcast %3 : vector<1x16xf32> to vector<16x16xf32>
    %5 = arith.addf %2, %4 : vector<16x16xf32>
    %cst_5 = arith.constant dense<0xFF800000> : vector<16xf32>
    %6 = vector.multi_reduction <maximumf>, %5, %cst_5 [1] : vector<16x16xf32> to vector<16xf32>
    %7 = vector.shape_cast %6 : vector<16xf32> to vector<16x1xf32>
    %cst_6 = arith.constant dense<0x7F800000> : vector<16xf32>
    %8 = vector.multi_reduction <minimumf>, %5, %cst_6 [1] : vector<16x16xf32> to vector<16xf32>
    %9 = vector.shape_cast %8 : vector<16xf32> to vector<16x1xf32>
    %10 = arith.subf %7, %9 : vector<16x1xf32>
    %11 = tpu.reciprocal %10 : vector<16x1xf32> -> vector<16x1xf32>
    %12 = vector.broadcast %9 : vector<16x1xf32> to vector<16x16xf32>
    %13 = arith.subf %5, %12 : vector<16x16xf32>
    %14 = vector.broadcast %11 : vector<16x1xf32> to vector<16x16xf32>
    %15 = arith.mulf %13, %14 : vector<16x16xf32>
    %16 = arith.mulf %15, %15 : vector<16x16xf32>
    %cst_7 = arith.constant dense<0.000000e+00> : vector<16xf32>
    %17 = vector.multi_reduction <add>, %16, %cst_7 [1] : vector<16x16xf32> to vector<16xf32>
    %18 = vector.shape_cast %17 : vector<16xf32> to vector<16x1xf32>
    %19 = math.rsqrt %18 : vector<16x1xf32>
    %cst_8 = arith.constant 9.99999995E+11 : f32
    %20 = vector.broadcast %cst_8 : f32 to vector<16x1xf32>
    %21 = arith.minimumf %19, %20 : vector<16x1xf32>
    %22 = vector.broadcast %21 : vector<16x1xf32> to vector<16x16xf32>
    %23 = arith.mulf %15, %22 : vector<16x16xf32>
    %c0_9 = arith.constant 0 : index
    %c0_10 = arith.constant 0 : index
    %24 = vector.load %arg4[%c0_9, %c0_10] : memref<16x16xf32, #tpu.memory_space<vmem>>, vector<16x16xf32>
    tpu.vector_store %arg4[%c0_9, %c0_10], %23 {strides = array<i32>} : memref<16x16xf32, #tpu.memory_space<vmem>>, vector<16x16xf32>,
    return
  }
  func.func @transform_0(%arg0: i32) -> (i32, i32) {
    %c0_i32 = arith.constant 0 : i32
    %c0_i32_0 = arith.constant 0 : i32
    return %arg0, %c0_i32 : i32, i32
  }
  func.func @transform_1(%arg0: i32) -> (i32, i32) {
    %c0_i32 = arith.constant 0 : i32
    %c0_i32_0 = arith.constant 0 : i32
    %c0_i32_1 = arith.constant 0 : i32
    return %c0_i32, %c0_i32_0 : i32, i32
  }
  func.func @transform_2(%arg0: i32) -> (i32, i32) {
    %c0_i32 = arith.constant 0 : i32
    %c0_i32_0 = arith.constant 0 : i32
    %c0_i32_1 = arith.constant 0 : i32
    return %c0_i32, %c0_i32_0 : i32, i32
  }
  func.func @transform_3(%arg0: i32) -> (i32, i32) {
    %c0_i32 = arith.constant 0 : i32
    %c0_i32_0 = arith.constant 0 : i32
    return %arg0, %c0_i32 : i32, i32
  }
}

</mosaic_0001>

<llo_original>
// kernel: tpu_custom_call.1
$region0: #{tpu_custom_call.1}
  #allocation0 [shape = 'u32[]', space=smem, size = 0x4, offset = 0x4, fixed_abs, tag = 'smem constant byte address 0x4 - core index']
  #allocation1 [shape = 'u32[72,128]{1,0:T(1,128)}', space=vmem, size = 0x9000, scoped, tag = 'internal scratch']
  %s0 = inlined_call_operand.vmem [shape: bf16[16,32], index: 0, kind: input, shape index: {}]
  %s1 = inlined_call_operand.vmem [shape: bf16[32,16], index: 1, kind: input, shape index: {}]
  %s2 = inlined_call_operand.vmem [shape: f32[1,16], index: 2, kind: input, shape index: {}]
  %s3 = inlined_call_operand.hbm [shape: f32[16,16], index: 3, kind: output, shape index: {}]
  %s4 = sld [smem:[#allocation0]]
  $region22: #{tpu_custom_call.1} parent=0
    _
  %s6 = ssub.s32 1, %s4
  %s7 = scalar_select 0, %s6, %s4
  $region1: #{tpu_custom_call.1} parent=0
    #allocation2 [shape = 'u8[8192]{0}', space=vmem, size = 0x2000, scoped, tag = 'output window, operand 0, single buffered']
    #allocation3 [shape = 's32[1]{0}', space=sflag, size = 0x4, scoped, tag = 'scoped memory for tpu_custom_call.1']
    %8 = vsyncpa [#allocation3], 0
    // Predicated region
    $region2: #{tpu_custom_call.1} parent=1 // pred_check
      _
    $region3: #{tpu_custom_call.1} parent=1 // pred_check_branch
      %10 = sbr.rel (0) target = $region5
    $region4: #{tpu_custom_call.1} parent=1 // pred_region
      _
    $region5: #{tpu_custom_call.1} parent=1 // pred_fallthru
      _
    // Predicated region
    $region6: #{tpu_custom_call.1} parent=1 // pred_check
      _
    $region7: #{tpu_custom_call.1} parent=1 // pred_check_branch
      %12 = sbr.rel (0) target = $region9
    $region8: #{tpu_custom_call.1} parent=1 // pred_region
      _
    $region9: #{tpu_custom_call.1} parent=1 // pred_fallthru
      _
    // Predicated region
    $region10: #{tpu_custom_call.1} parent=1 // pred_check
      _
    $region11: #{tpu_custom_call.1} parent=1 // pred_check_branch
      %14 = sbr.rel (0) target = $region13
    $region12: #{tpu_custom_call.1} parent=1 // pred_region
      _
    $region13: #{tpu_custom_call.1} parent=1 // pred_fallthru
      _
    %v16 = vld [vmem:[%s0] sm:$0xf]
    %v17 = vld [vmem:[%s0 + $0x4] sm:$0xf]
    %v18 = vld [vmem:[%s1] sm:$0xf]
    %v19 = vld [vmem:[%s1 + $0x4] sm:$0xf]
    %v20 = vld [vmem:[%s1 + $0x8] sm:$0xf]
    %v21 = vld [vmem:[%s1 + $0xc] sm:$0xf]
    %v22 = vld [vmem:[%s2] sm:$0x1]
    %v24 = vperm.slane %v22, 0
    %v28 = vunpack.c.l.b16 %v16
    %v29 = vunpack.c.l.b16 %v17
    %v30 = vpack.c.b16 %v29, %v28
    %v35 = vunpack.c.l.b16 %v18
    %v36 = vunpack.c.l.b16 %v19
    %v37 = vunpack.c.l.b16 %v20
    %v38 = vunpack.c.l.b16 %v21
    %v39 = vpack.c.b16 %v36, %v35
    %v40 = vpack.c.b16 %v38, %v37
    %vm43 = vcmask 261120
    %v45 = vsel %vm43, %v30, 0
    %47 = vmatpush.bf16.msra.mxu0 0
    %48 = vmatpush.bf16.msra.mxu0 0
    %49 = vmatpush.bf16.msra.mxu0 0
    %50 = vmatpush.bf16.msra.mxu0 0
    %51 = vmatpush.bf16.msra.mxu0 0
    %52 = vmatpush.bf16.msra.mxu0 0
    %53 = vmatpush.bf16.msra.mxu0 %v40
    %54 = vmatpush.bf16.msra.mxu0 %v39
    %55 = vmatmul.bf16.gmra.mxu0 %v45
    %v56 = vpop.f32.mrf.mxu0
    %v57 = vadd.f32 %v24, %v56
    %v58 = vpop.f32.mrf.mxu0
    %v59 = vadd.f32 %v24, %v58
    %60 = vdwg.mxu0
    %vm61 = vcmask 130048
    %v62 = vsel %vm61, %v57, -inf
    %63 = vmax.xlane.f32.xlu0 %v62
    %v64 = vpop.xlane.xlu0 %63
    %v65 = vsel %vm61, %v59, -inf
    %66 = vmax.xlane.f32.xlu0 %v65
    %v67 = vpop.xlane.xlu0 %66
    %v68 = vsel %vm61, %v57, inf
    %69 = vmin.xlane.f32.xlu0 %v68
    %v70 = vpop.xlane.xlu0 %69
    %v71 = vsel %vm61, %v59, inf
    %72 = vmin.xlane.f32.xlu0 %v71
    %v73 = vpop.xlane.xlu0 %72
    %v74 = vsub.f32 %v64, %v70
    %v75 = vsub.f32 %v67, %v73
    %v76 = vrcp.pop %v74
    %v77 = vmul.f32 %v74, %v76
    %v78 = vsub.f32 1.0, %v77
    %v79 = vmul.f32 %v76, %v78
    %v80 = vadd.f32 %v76, %v79
    %vm81 = vweird.f32 %v74
    %vm82 = vweird.f32 %v76
    %vm83 = vmor %vm81, %vm82
    %v84 = vsel %vm83, %v76, %v80
    %v85 = vand.u32 2147483647, %v74
    %vm86 = vcmp.eq.f32.partialorder %v85, 8.507059e+37
    %v87 = vand.u32 %v74, 2147483648
    %v88 = vor.u32 1.1754944e-38, %v87
    %v89 = vsel %vm86, %v88, %v84
    %v90 = vrcp.pop %v75
    %v91 = vmul.f32 %v75, %v90
    %v92 = vsub.f32 1.0, %v91
    %v93 = vmul.f32 %v90, %v92
    %v94 = vadd.f32 %v90, %v93
    %vm95 = vweird.f32 %v75
    %vm96 = vweird.f32 %v90
    %vm97 = vmor %vm95, %vm96
    %v98 = vsel %vm97, %v90, %v94
    %v99 = vand.u32 2147483647, %v75
    %vm100 = vcmp.eq.f32.partialorder %v99, 8.507059e+37
    %v101 = vand.u32 %v75, 2147483648
    %v102 = vor.u32 1.1754944e-38, %v101
    %v103 = vsel %vm100, %v102, %v98
    %v104 = vsub.f32 %v57, %v70
    %v105 = vsub.f32 %v59, %v73
    %v106 = vmul.f32 %v104, %v89
    %v107 = vmul.f32 %v105, %v103
    %v108 = vmul.f32 %v106, %v106
    %v109 = vmul.f32 %v107, %v107
    %v110 = vsel %vm61, %v108, 0.0
    %111 = vadd.xlane.f32.xlu0 %v110
    %v112 = vpop.xlane.xlu0 %111
    %v113 = vsel %vm61, %v109, 0.0
    %114 = vadd.xlane.f32.xlu0 %v113
    %v115 = vpop.xlane.xlu0 %114
    %v116 = vrsqrt.pop %v112
    %v117 = vmul.f32 %v116, %v112
    %v118 = vmul.f32 %v117, %v116
    %v119 = vmul.f32 0.5, %v118
    %v120 = vsub.f32 1.5, %v119
    %v121 = vmul.f32 %v116, %v120
    %vm122 = vweird.f32 %v112
    %vm123 = vweird.f32 %v116
    %vm124 = vmor %vm122, %vm123
    %v125 = vsel %vm124, %v116, %v121
    %v126 = vrsqrt.pop %v115
    %v127 = vmul.f32 %v126, %v115
    %v128 = vmul.f32 %v127, %v126
    %v129 = vmul.f32 0.5, %v128
    %v130 = vsub.f32 1.5, %v129
    %v131 = vmul.f32 %v126, %v130
    %vm132 = vweird.f32 %v115
    %vm133 = vweird.f32 %v126
    %vm134 = vmor %vm132, %vm133
    %v135 = vsel %vm134, %v126, %v131
    %v136 = vmin.f32 %v125, 1e+12
    %v137 = vmin.f32 %v135, 1e+12
    %v138 = vmul.f32 %v106, %v136
    %v139 = vmul.f32 %v107, %v137
    %140 = vst.msk [vmem:[#allocation2] sm:$0xff] %vm61, %v138
    %141 = vst.msk [vmem:[#allocation2 + $0x8] sm:$0xff] %vm61, %v139
    // Predicated region
    $region14: #{tpu_custom_call.1} parent=1 // pred_check
      _
    $region15: #{tpu_custom_call.1} parent=1 // pred_check_branch
      %143 = sbr.rel (0) target = $region17
    $region16: #{tpu_custom_call.1} parent=1 // pred_region
      %145 = vsyncadd [#allocation3], 0
      %s146 = sshll.u32 [#allocation2], 4
      %s147 = int_to_ptr.vmem [resolvable:$true] %s146
      %s148 = sshll.u32 %s3, 4
      %s149 = int_to_ptr.hbm [resolvable:$true] %s148
      %154 = dma.vmem_to_hbm [thread:$0]  %s147, 256, %s149, [#allocation3], 128, 128, 8
    $region17: #{tpu_custom_call.1} parent=1 // pred_fallthru
      _
    // Predicated region
    $region18: #{tpu_custom_call.1} parent=1 // pred_check
      _
    $region19: #{tpu_custom_call.1} parent=1 // pred_check_branch
      %156 = sbr.rel (0) target = $region21
    $region20: #{tpu_custom_call.1} parent=1 // pred_region
      %158 = dma.done [#allocation3], 256
    $region21: #{tpu_custom_call.1} parent=1 // pred_fallthru
      _
    %159 = vsyncpa [#allocation3], 1

</llo_original>
